<compile_context>
chip_gen: v5e
topology: v5e:2x2
jax: 0.10.0
libtpu: 0.0.40
codegen_flags: <defaults>
</compile_context>

<pallas_src>
import functools

import jax
import jax.numpy as jnp
from jax.experimental import pallas as pl
from jax.experimental.pallas import tpu as pltpu

_LANE = 128          # lane width
_SUBLANE_BF16 = 16   # bf16 packs 16 sublanes per vreg -> batch tile granularity


def _round_up(v, m):
    return (v + m - 1) // m * m


def _pick_tile(padded_dim, max_tile, granularity):
    """Largest multiple of `granularity` dividing `padded_dim`, <= max_tile."""
    t = min(max_tile, padded_dim)
    t = (t // granularity) * granularity
    while t > granularity and padded_dim % t != 0:
        t -= granularity
    return max(t, granularity)


def _cortical_kernel(x_ref, wt_ref, lif_ref, spk_ref, mem_out_ref, acc_ref, *,
                     threshold):
    k = pl.program_id(2)

    @pl.when(k == 0)
    def _():
        acc_ref[...] = jnp.zeros_like(acc_ref)

    # bf16 x bf16 -> f32 on the MXU, accumulated in VMEM scratch.
    acc_ref[...] += jnp.dot(x_ref[...], wt_ref[...],
                            preferred_element_type=jnp.float32)

    @pl.when(k == pl.num_programs(2) - 1)
    def _():
        # lif_ref is the batch-invariant term beta*mem - reset*thr + bias,
        # precomputed in the wrapper as a (1, tn) f32 row.
        mem_new = acc_ref[...] + lif_ref[...]                    # (tm, tn) f32
        spk_ref[...] = (mem_new > threshold).astype(spk_ref.dtype)
        mem_out_ref[...] = mem_new


def prepare_cortical_params(weight, bias):
    """One-time parameter prep: transpose + pad to (Inp, Outp) + bf16 cast.

    weight: (Out, In) f32 (nn.Linear layout).  Do NOT call per forward step.
    Returns (weight_t_padded_bf16, bias_f32).
    """
    out_size, in_size = weight.shape
    inp = _round_up(in_size, _LANE)
    outp = _round_up(out_size, _LANE)
    wt = jnp.pad(jnp.asarray(weight, jnp.float32).T,
                 ((0, inp - in_size), (0, outp - out_size))).astype(jnp.bfloat16)
    return wt, jnp.asarray(bias, jnp.float32)


def cortical_layer_forward(x, weight_t_p, bias, mem, *, beta=0.99, threshold=1.0,
                           tm=256, tn=1024, tk=1024):
    """CorticalLayer forward.

    x:          (B, In)     f32 (or bf16) activations.
    weight_t_p: (Inp, Outp) bf16, pre-padded/transposed via prepare_cortical_params.
    bias:       (Out,)      f32.
    mem:        (Out,)      f32 shared membrane state (as in the PyTorch module).
    Returns (spk (B, Out) bf16 0/1, mem_new (B, Out) f32).
    """
    B, In = x.shape
    (Out,) = bias.shape
    Inp, Outp = weight_t_p.shape
    assert weight_t_p.dtype == jnp.bfloat16
    assert Inp == _round_up(In, _LANE) and Outp == _round_up(Out, _LANE)
    assert mem.shape == (Out,)

    Bp = _round_up(B, _SUBLANE_BF16)
    tm = _pick_tile(Bp, tm, _SUBLANE_BF16)
    tn = _pick_tile(Outp, tn, _LANE)
    tk = _pick_tile(Inp, tk, _LANE)
    # v7x has 2 TensorCores sharing the grid's "parallel" axes: if both i and j
    # collapsed to a single block, split the output axis when it is big enough.
    if Bp // tm == 1 and Outp // tn == 1 and Outp >= 2 * _LANE:
        tn = _pick_tile(Outp, Outp // 2, _LANE)

    # Per-call activation prep: bf16 cast + pad.  O(B*In), cheap; the weight is
    # never touched here.
    xp = x.astype(jnp.bfloat16)
    if (Bp, Inp) != (B, In):
        xp = jnp.pad(xp, ((0, Bp - B), (0, Inp - In)))

    # Batch-invariant LIF term, O(Out) wrapper-side work.
    reset = (mem > threshold).astype(jnp.float32)
    lif_bias = (beta * mem - reset * threshold + bias).astype(jnp.float32)
    lif_bias = jnp.pad(lif_bias, (0, Outp - Out)).reshape(1, Outp)

    grid = (Bp // tm, Outp // tn, Inp // tk)

    # Double-buffered VMEM footprint; give headroom but stay under v7x's 64 MiB
    # physical VMEM (also raises v5e's 16 MiB scoped default when tiles grow).
    vmem_need = (2 * (tm * tk * 2 + tk * tn * 2)     # x, W^T bf16 input blocks
                 + 2 * tn * 4                         # lif_bias blocks
                 + 2 * (tm * tn * 2 + tm * tn * 4)    # spk bf16 + mem f32 outputs
                 + tm * tn * 4)                       # f32 accumulator scratch
    vmem_limit = int(min(max(2 * vmem_need, 32 << 20), 48 << 20))

    cost = pl.CostEstimate(
        flops=2 * Bp * Inp * Outp,
        transcendentals=0,
        bytes_accessed=(Bp * Inp * 2 + Inp * Outp * 2 + Outp * 4
                        + Bp * Outp * (2 + 4)))

    kernel = functools.partial(_cortical_kernel, threshold=threshold)
    spk, mem_new = pl.pallas_call(
        kernel,
        out_shape=(jax.ShapeDtypeStruct((Bp, Outp), jnp.bfloat16),
                   jax.ShapeDtypeStruct((Bp, Outp), jnp.float32)),
        grid_spec=pltpu.PrefetchScalarGridSpec(
            num_scalar_prefetch=0,
            grid=grid,
            in_specs=[
                pl.BlockSpec((tm, tk), lambda i, j, k: (i, k)),   # x tile (bf16)
                pl.BlockSpec((tk, tn), lambda i, j, k: (k, j)),   # W^T tile (bf16)
                pl.BlockSpec((1, tn), lambda i, j, k: (0, j)),    # lif_bias row
            ],
            out_specs=[
                pl.BlockSpec((tm, tn), lambda i, j, k: (i, j)),   # spk (bf16)
                pl.BlockSpec((tm, tn), lambda i, j, k: (i, j)),   # mem_new (f32)
            ],
            scratch_shapes=[pltpu.VMEM((tm, tn), jnp.float32)],
        ),
        compiler_params=pltpu.CompilerParams(
            dimension_semantics=("parallel", "parallel", "arbitrary"),
            vmem_limit_bytes=vmem_limit),
        cost_estimate=cost,
    )(xp, weight_t_p, lif_bias)

    # Pad-free fast path when B/Out are already aligned; otherwise one slice.
    if (Bp, Outp) != (B, Out):
        spk = spk[:B, :Out]
        mem_new = mem_new[:B, :Out]
    return spk, mem_new


if __name__ == "__main__":
    input_size, output_size, batch = 48, 40, 5
    beta, threshold = 0.99, 1.0

    key = jax.random.PRNGKey(0)
    kx, kw, kb = jax.random.split(key, 3)

    # PyTorch nn.Linear-style uniform init.
    bound = 1.0 / (input_size ** 0.5)
    weight = jax.random.uniform(kw, (output_size, input_size),
                                minval=-bound, maxval=bound, dtype=jnp.float32)
    bias = jax.random.uniform(kb, (output_size,),
                              minval=-bound, maxval=bound, dtype=jnp.float32)
    mem = jnp.zeros((output_size,), jnp.float32)   # self.mem = torch.zeros(output_size)

    # Scale inputs so some neurons actually cross threshold=1.0.
    x = 4.0 * jax.random.normal(kx, (batch, input_size), dtype=jnp.float32)

    # One-time parameter prep (transpose + pad + bf16 cast).
    weight_t_p, bias_f32 = prepare_cortical_params(weight, bias)

    spk, mem_new = cortical_layer_forward(x, weight_t_p, bias_f32, mem,
                                          beta=beta, threshold=threshold)
    spk = jax.block_until_ready(spk)
    mem_new = jax.block_until_ready(mem_new)

    # f32 reference (Linear + Leaky LIF, reset_mechanism="subtract").
    cur = x @ weight.T + bias
    reset = (mem > threshold).astype(jnp.float32)
    ref_mem = beta * mem + cur - reset * threshold
    ref_spk = (ref_mem > threshold).astype(jnp.float32)

    assert spk.shape == (batch, output_size)
    assert mem_new.shape == (batch, output_size)
    # bf16 MXU inputs -> tolerance-aware membrane check.
    assert jnp.allclose(mem_new, ref_mem, rtol=3e-2, atol=3e-2)
    # spk must be the exact heaviside of the kernel's own membrane state...
    spk_f32 = spk.astype(jnp.float32)
    assert jnp.array_equal(spk_f32, (mem_new > threshold).astype(jnp.float32))
    # ...and must agree with the f32 reference away from the threshold boundary.
    safe = jnp.abs(ref_mem - threshold) > 0.05
    assert jnp.array_equal(jnp.where(safe, spk_f32, ref_spk), ref_spk)

    print("KERNEL_OK")
</pallas_src>

<mosaic_0001>
module attributes {stable_mosaic.version = 11 : i64} {
  func.func @_cortical_kernel(%arg0: i32, %arg1: i32, %arg2: i32, %arg3: memref<16x128xbf16, #tpu.memory_space<vmem>>, %arg4: memref<128x128xbf16, #tpu.memory_space<vmem>>, %arg5: memref<1x128xf32, #tpu.memory_space<vmem>>, %arg6: memref<16x128xbf16, #tpu.memory_space<vmem>>, %arg7: memref<16x128xf32, #tpu.memory_space<vmem>>, %arg8: memref<16x128xf32, #tpu.memory_space<vmem>>) attributes {dimension_semantics = [#tpu.dimension_semantics<parallel>, #tpu.dimension_semantics<parallel>, #tpu.dimension_semantics<arbitrary>], iteration_bounds = array<i64: 1, 1, 1>, scalar_prefetch = 0 : i64, scratch_operands = 1 : i64, tpu.core_type = #tpu.core_type<tc>, window_params = [{transform_indices = @transform_0, window_bounds = array<i64: 16, 128>}, {transform_indices = @transform_1, window_bounds = array<i64: 128, 128>}, {transform_indices = @transform_2, window_bounds = array<i64: 1, 128>}, {transform_indices = @transform_3, window_bounds = array<i64: 16, 128>}, {transform_indices = @transform_4, window_bounds = array<i64: 16, 128>}]} {
    %c0_i32 = arith.constant 0 : i32
    %0 = arith.cmpi eq, %arg2, %c0_i32 : i32
    %1 = arith.extui %0 : i1 to i32
    %c0_i32_0 = arith.constant 0 : i32
    %2 = arith.cmpi ne, %1, %c0_i32_0 : i32
    scf.if %2 {
      %cst_10 = arith.constant 0.000000e+00 : f32
      %12 = vector.broadcast %cst_10 : f32 to vector<16x128xf32>
      %c0_11 = arith.constant 0 : index
      %c0_12 = arith.constant 0 : index
      %13 = vector.load %arg8[%c0_11, %c0_12] : memref<16x128xf32, #tpu.memory_space<vmem>>, vector<16x128xf32>
      tpu.vector_store %arg8[%c0_11, %c0_12], %12 {strides = array<i32>} : memref<16x128xf32, #tpu.memory_space<vmem>>, vector<16x128xf32>,
    } else {
    }
    %c0 = arith.constant 0 : index
    %c0_1 = arith.constant 0 : index
    %3 = vector.load %arg8[%c0, %c0_1] : memref<16x128xf32, #tpu.memory_space<vmem>>, vector<16x128xf32>
    %c0_2 = arith.constant 0 : index
    %c0_3 = arith.constant 0 : index
    %4 = vector.load %arg3[%c0_2, %c0_3] : memref<16x128xbf16, #tpu.memory_space<vmem>>, vector<16x128xbf16>
    %c0_4 = arith.constant 0 : index
    %c0_5 = arith.constant 0 : index
    %5 = vector.load %arg4[%c0_4, %c0_5] : memref<128x128xbf16, #tpu.memory_space<vmem>>, vector<128x128xbf16>
    %cst = arith.constant dense<0.000000e+00> : vector<16x128xf32>
    %6 = tpu.matmul %4, %5, %cst {dimension_numbers = #tpu.dot_dimension_numbers<[1], [0], [0], [1], [0, 0, 1, 1], [], []>} : vector<16x128xbf16>, vector<128x128xbf16>, vector<16x128xf32> -> vector<16x128xf32>
    %7 = arith.addf %3, %6 : vector<16x128xf32>
    %c0_6 = arith.constant 0 : index
    %c0_7 = arith.constant 0 : index
    %8 = vector.load %arg8[%c0_6, %c0_7] : memref<16x128xf32, #tpu.memory_space<vmem>>, vector<16x128xf32>
    tpu.vector_store %arg8[%c0_6, %c0_7], %7 {strides = array<i32>} : memref<16x128xf32, #tpu.memory_space<vmem>>, vector<16x128xf32>,
    %c0_i32_8 = arith.constant 0 : i32
    %9 = arith.cmpi eq, %arg2, %c0_i32_8 : i32
    %10 = arith.extui %9 : i1 to i32
    %c0_i32_9 = arith.constant 0 : i32
    %11 = arith.cmpi ne, %10, %c0_i32_9 : i32
    scf.if %11 {
      %c0_10 = arith.constant 0 : index
      %c0_11 = arith.constant 0 : index
      %12 = vector.load %arg8[%c0_10, %c0_11] : memref<16x128xf32, #tpu.memory_space<vmem>>, vector<16x128xf32>
      %c0_12 = arith.constant 0 : index
      %c0_13 = arith.constant 0 : index
      %13 = vector.load %arg5[%c0_12, %c0_13] : memref<1x128xf32, #tpu.memory_space<vmem>>, vector<1x128xf32>
      %14 = vector.broadcast %13 : vector<1x128xf32> to vector<16x128xf32>
      %15 = arith.addf %12, %14 : vector<16x128xf32>
      %cst_14 = arith.constant 1.000000e+00 : f32
      %16 = vector.broadcast %cst_14 : f32 to vector<16x128xf32>
      %17 = arith.cmpf ogt, %15, %16 : vector<16x128xf32>
      %18 = arith.extui %17 : vector<16x128xi1> to vector<16x128xi32>
      %19 = arith.sitofp %18 : vector<16x128xi32> to vector<16x128xf32>
      %20 = arith.truncf %19 : vector<16x128xf32> to vector<16x128xbf16>
      %c0_15 = arith.constant 0 : index
      %c0_16 = arith.constant 0 : index
      %21 = vector.load %arg6[%c0_15, %c0_16] : memref<16x128xbf16, #tpu.memory_space<vmem>>, vector<16x128xbf16>
      tpu.vector_store %arg6[%c0_15, %c0_16], %20 {strides = array<i32>} : memref<16x128xbf16, #tpu.memory_space<vmem>>, vector<16x128xbf16>,
      %c0_17 = arith.constant 0 : index
      %c0_18 = arith.constant 0 : index
      %22 = vector.load %arg7[%c0_17, %c0_18] : memref<16x128xf32, #tpu.memory_space<vmem>>, vector<16x128xf32>
      tpu.vector_store %arg7[%c0_17, %c0_18], %15 {strides = array<i32>} : memref<16x128xf32, #tpu.memory_space<vmem>>, vector<16x128xf32>,
    } else {
    }
    return
  }
  func.func @transform_0(%arg0: i32, %arg1: i32, %arg2: i32) -> (i32, i32) {
    %c0_i32 = arith.constant 0 : i32
    return %arg0, %arg2 : i32, i32
  }
  func.func @transform_1(%arg0: i32, %arg1: i32, %arg2: i32) -> (i32, i32) {
    %c0_i32 = arith.constant 0 : i32
    return %arg2, %arg1 : i32, i32
  }
  func.func @transform_2(%arg0: i32, %arg1: i32, %arg2: i32) -> (i32, i32) {
    %c0_i32 = arith.constant 0 : i32
    %c0_i32_0 = arith.constant 0 : i32
    return %c0_i32, %arg1 : i32, i32
  }
  func.func @transform_3(%arg0: i32, %arg1: i32, %arg2: i32) -> (i32, i32) {
    %c0_i32 = arith.constant 0 : i32
    return %arg0, %arg1 : i32, i32
  }
  func.func @transform_4(%arg0: i32, %arg1: i32, %arg2: i32) -> (i32, i32) {
    %c0_i32 = arith.constant 0 : i32
    return %arg0, %arg1 : i32, i32
  }
}

</mosaic_0001>

<llo_original>
// kernel: tpu_custom_call.1
$region0: #{tpu_custom_call.1}
  #allocation0 [shape = 'u32[]', space=smem, size = 0x4, offset = 0x4, fixed_abs, tag = 'smem constant byte address 0x4 - core index']
  #allocation1 [shape = 'u32[72,128]{1,0:T(1,128)}', space=vmem, size = 0x9000, scoped, tag = 'internal scratch']
  #allocation2 [shape = 'f32[16,128]{1,0:T(8,128)}', space=vmem, size = 0x2000, scoped, tag = 'scratch operand']
  %s0 = inlined_call_operand.hbm [shape: bf16[16,128], index: 0, kind: input, shape index: {}]
  %s1 = inlined_call_operand.hbm [shape: bf16[128,128], index: 1, kind: input, shape index: {}]
  %s2 = inlined_call_operand.vmem [shape: f32[1,128], index: 2, kind: input, shape index: {}]
  %s3 = inlined_call_operand.hbm [shape: bf16[16,128], index: 3, kind: output, shape index: {0}]
  %s4 = inlined_call_operand.hbm [shape: f32[16,128], index: 4, kind: output, shape index: {1}]
  %5 = xla_tuple %s3, %s4
  %s6 = sld [smem:[#allocation0]]
  $region46: #{tpu_custom_call.1} parent=0
    _
  %s8 = ssub.s32 1, %s6
  %s9 = scalar_select 0, %s8, %s6
  $region1: #{tpu_custom_call.1} parent=0
    #allocation3 [shape = 'u8[4096]{0}', space=vmem, size = 0x1000, scoped, tag = 'input window, operand 0, single buffered']
    #allocation4 [shape = 's32[1]{0}', space=sflag, size = 0x4, scoped, tag = 'scoped memory for tpu_custom_call.1']
    #allocation5 [shape = 's32[1]{0}', space=sflag, size = 0x4, scoped, tag = 'scoped memory for tpu_custom_call.1']
    #allocation6 [shape = 'u8[32768]{0}', space=vmem, size = 0x8000, scoped, tag = 'input window, operand 1, single buffered']
    #allocation7 [shape = 's32[1]{0}', space=sflag, size = 0x4, scoped, tag = 'scoped memory for tpu_custom_call.1']
    #allocation8 [shape = 'u8[4096]{0}', space=vmem, size = 0x1000, scoped, tag = 'output window, operand 0, single buffered']
    #allocation9 [shape = 'u8[8192]{0}', space=vmem, size = 0x2000, scoped, tag = 'output window, operand 1, single buffered']
    #allocation10 [shape = 's32[1]{0}', space=sflag, size = 0x4, scoped, tag = 'scoped memory for tpu_custom_call.1']
    %10 = vsyncpa [#allocation4], 0
    %11 = vsyncpa [#allocation7], 0
    %12 = vsyncpa [#allocation5], 0
    %13 = vsyncpa [#allocation10], 0
    // Predicated region
    $region2: #{tpu_custom_call.1} parent=1 // pred_check
      _
    $region3: #{tpu_custom_call.1} parent=1 // pred_check_branch
      %15 = sbr.rel (0) target = $region5
    $region4: #{tpu_custom_call.1} parent=1 // pred_region
      %17 = vsyncadd [#allocation4], 0
      %s18 = sshll.u32 %s0, 4
      %s19 = int_to_ptr.hbm [resolvable:$true] %s18
      %s20 = sshll.u32 [#allocation3], 4
      %s21 = int_to_ptr.vmem [resolvable:$true] %s20
      %26 = dma.hbm_to_vmem [thread:$0]  %s19, 128, %s21, [#allocation4], 64, 64, 4
    $region5: #{tpu_custom_call.1} parent=1 // pred_fallthru
      _
    // Predicated region
    $region6: #{tpu_custom_call.1} parent=1 // pred_check
      _
    $region7: #{tpu_custom_call.1} parent=1 // pred_check_branch
      %28 = sbr.rel (0) target = $region9
    $region8: #{tpu_custom_call.1} parent=1 // pred_region
      %30 = vsyncadd [#allocation7], 0
      %s31 = sshll.u32 %s1, 4
      %s32 = int_to_ptr.hbm [resolvable:$true] %s31
      %s33 = sshll.u32 [#allocation6], 4
      %s34 = int_to_ptr.vmem [resolvable:$true] %s33
      %39 = dma.hbm_to_vmem [thread:$0]  %s32, 1024, %s34, [#allocation7], 64, 64, 4
    $region9: #{tpu_custom_call.1} parent=1 // pred_fallthru
      _
    // Predicated region
    $region10: #{tpu_custom_call.1} parent=1 // pred_check
      _
    $region11: #{tpu_custom_call.1} parent=1 // pred_check_branch
      %41 = sbr.rel (0) target = $region13
    $region12: #{tpu_custom_call.1} parent=1 // pred_region
      _
    $region13: #{tpu_custom_call.1} parent=1 // pred_fallthru
      _
    // Predicated region
    $region14: #{tpu_custom_call.1} parent=1 // pred_check
      _
    $region15: #{tpu_custom_call.1} parent=1 // pred_check_branch
      %43 = sbr.rel (0) target = $region17
    $region16: #{tpu_custom_call.1} parent=1 // pred_region
      %45 = dma.done [#allocation4], 128
    $region17: #{tpu_custom_call.1} parent=1 // pred_fallthru
      _
    // Predicated region
    $region18: #{tpu_custom_call.1} parent=1 // pred_check
      _
    $region19: #{tpu_custom_call.1} parent=1 // pred_check_branch
      %47 = sbr.rel (0) target = $region21
    $region20: #{tpu_custom_call.1} parent=1 // pred_region
      %49 = dma.done [#allocation7], 1024
    $region21: #{tpu_custom_call.1} parent=1 // pred_fallthru
      _
    %p50 = scmp.eq.s32.totalorder 0, 0
    // Predicated region
    $region22: #{tpu_custom_call.1} parent=1 // pred_check
      %p51 = pneg %p50
    $region23: #{tpu_custom_call.1} parent=1 // pred_check_branch
      %53 = sbr.rel (%p51) target = $region25
    $region24: #{tpu_custom_call.1} parent=1 // pred_region
      %54 = vst [vmem:[#allocation2] sm:$0xff] 0.0
      %55 = vst [vmem:[#allocation2 + $0x8] sm:$0xff] 0.0
    $region25: #{tpu_custom_call.1} parent=1 // pred_fallthru
      _
    %v56 = vld [vmem:[#allocation2] sm:$0xff]
    %v57 = vld [vmem:[#allocation2 + $0x8] sm:$0xff]
    %v58 = vld [vmem:[#allocation3] sm:$0xf]
    %v59 = vld [vmem:[#allocation3 + $0x4] sm:$0xf]
    %v60 = vld [vmem:[#allocation6] sm:$0xf]
    %v61 = vld [vmem:[#allocation6 + $0x4] sm:$0xf]
    %v62 = vld [vmem:[#allocation6 + $0x8] sm:$0xf]
    %v63 = vld [vmem:[#allocation6 + $0xc] sm:$0xf]
    %v64 = vld [vmem:[#allocation6 + $0x10] sm:$0xf]
    %v65 = vld [vmem:[#allocation6 + $0x14] sm:$0xf]
    %v66 = vld [vmem:[#allocation6 + $0x18] sm:$0xf]
    %v67 = vld [vmem:[#allocation6 + $0x1c] sm:$0xf]
    %v68 = vld [vmem:[#allocation6 + $0x20] sm:$0xf]
    %v69 = vld [vmem:[#allocation6 + $0x24] sm:$0xf]
    %v70 = vld [vmem:[#allocation6 + $0x28] sm:$0xf]
    %v71 = vld [vmem:[#allocation6 + $0x2c] sm:$0xf]
    %v72 = vld [vmem:[#allocation6 + $0x30] sm:$0xf]
    %v73 = vld [vmem:[#allocation6 + $0x34] sm:$0xf]
    %v74 = vld [vmem:[#allocation6 + $0x38] sm:$0xf]
    %v75 = vld [vmem:[#allocation6 + $0x3c] sm:$0xf]
    %v78 = vunpack.c.l.b16 %v58
    %v79 = vunpack.c.l.b16 %v59
    %v80 = vpack.c.b16 %v79, %v78
    %v98 = vunpack.c.l.b16 %v60
    %v99 = vunpack.c.l.b16 %v61
    %v100 = vunpack.c.l.b16 %v62
    %v101 = vunpack.c.l.b16 %v63
    %v102 = vunpack.c.l.b16 %v64
    %v103 = vunpack.c.l.b16 %v65
    %v104 = vunpack.c.l.b16 %v66
    %v105 = vunpack.c.l.b16 %v67
    %v106 = vunpack.c.l.b16 %v68
    %v107 = vunpack.c.l.b16 %v69
    %v108 = vunpack.c.l.b16 %v70
    %v109 = vunpack.c.l.b16 %v71
    %v110 = vunpack.c.l.b16 %v72
    %v111 = vunpack.c.l.b16 %v73
    %v112 = vunpack.c.l.b16 %v74
    %v113 = vunpack.c.l.b16 %v75
    %v114 = vpack.c.b16 %v99, %v98
    %v115 = vpack.c.b16 %v101, %v100
    %v116 = vpack.c.b16 %v103, %v102
    %v117 = vpack.c.b16 %v105, %v104
    %v118 = vpack.c.b16 %v107, %v106
    %v119 = vpack.c.b16 %v109, %v108
    %v120 = vpack.c.b16 %v111, %v110
    %v121 = vpack.c.b16 %v113, %v112
    %130 = vmatpush.bf16.msra.mxu0 %v121
    %131 = vmatpush.bf16.msra.mxu0 %v120
    %132 = vmatpush.bf16.msra.mxu0 %v119
    %133 = vmatpush.bf16.msra.mxu0 %v118
    %134 = vmatpush.bf16.msra.mxu0 %v117
    %135 = vmatpush.bf16.msra.mxu0 %v116
    %136 = vmatpush.bf16.msra.mxu0 %v115
    %137 = vmatpush.bf16.msra.mxu0 %v114
    %138 = vmatmul.bf16.gmra.mxu0 %v80
    %v139 = vpop.f32.mrf.mxu0
    %v140 = vadd.f32 0.0, %v139
    %v141 = vpop.f32.mrf.mxu0
    %v142 = vadd.f32 0.0, %v141
    %143 = vdwg.mxu0
    %v144 = vadd.f32 %v56, %v140
    %v145 = vadd.f32 %v57, %v142
    %146 = vst [vmem:[#allocation2] sm:$0xff] %v144
    %147 = vst [vmem:[#allocation2 + $0x8] sm:$0xff] %v145
    // Predicated region
    $region26: #{tpu_custom_call.1} parent=1 // pred_check
      %p148 = pneg %p50
    $region27: #{tpu_custom_call.1} parent=1 // pred_check_branch
      %150 = sbr.rel (%p148) target = $region29
    $region28: #{tpu_custom_call.1} parent=1 // pred_region
      %v151 = vld [vmem:[#allocation2] sm:$0xff]
      %v152 = vld [vmem:[#allocation2 + $0x8] sm:$0xff]
      %v153 = vld [vmem:[%s2] sm:$0x1]
      %v155 = vperm.slane %v153, 0
      %v157 = vadd.f32 %v151, %v155
      %v158 = vadd.f32 %v152, %v155
      %vm159 = vcmp.gt.f32.partialorder %v157, 1.0
      %vm160 = vcmp.gt.f32.partialorder %v158, 1.0
      %v161 = vsel %vm159, 1, 0
      %v162 = vsel %vm160, 1, 0
      %v163 = vcvt.s32.f32 %v161
      %v164 = vcvt.s32.f32 %v162
      %v165 = vpack.c.bf16 %v163, %v163
      %v166 = vpack.c.bf16 %v164, %v164
      %167 = vst [vmem:[#allocation8] sm:$0xf] %v165
      %168 = vst [vmem:[#allocation8 + $0x4] sm:$0xf] %v166
      %169 = vst [vmem:[#allocation9] sm:$0xff] %v157
      %170 = vst [vmem:[#allocation9 + $0x8] sm:$0xff] %v158
    $region29: #{tpu_custom_call.1} parent=1 // pred_fallthru
      _
    // Predicated region
    $region30: #{tpu_custom_call.1} parent=1 // pred_check
      _
    $region31: #{tpu_custom_call.1} parent=1 // pred_check_branch
      %172 = sbr.rel (0) target = $region33
    $region32: #{tpu_custom_call.1} parent=1 // pred_region
      %174 = vsyncadd [#allocation5], 0
      %s175 = sshll.u32 [#allocation8], 4
      %s176 = int_to_ptr.vmem [resolvable:$true] %s175
      %s177 = sshll.u32 %s3, 4
      %s178 = int_to_ptr.hbm [resolvable:$true] %s177
      %183 = dma.vmem_to_hbm [thread:$0]  %s176, 128, %s178, [#allocation5], 64, 64, 4
    $region33: #{tpu_custom_call.1} parent=1 // pred_fallthru
      _
    // Predicated region
    $region34: #{tpu_custom_call.1} parent=1 // pred_check
      _
    $region35: #{tpu_custom_call.1} parent=1 // pred_check_branch
      %185 = sbr.rel (0) target = $region37
    $region36: #{tpu_custom_call.1} parent=1 // pred_region
      %187 = vsyncadd [#allocation10], 0
      %s188 = sshll.u32 [#allocation9], 4
      %s189 = int_to_ptr.vmem [resolvable:$true] %s188
      %s190 = sshll.u32 %s4, 4
      %s191 = int_to_ptr.hbm [resolvable:$true] %s190
      %196 = dma.vmem_to_hbm [thread:$0]  %s189, 256, %s191, [#allocation10], 128, 128, 8
    $region37: #{tpu_custom_call.1} parent=1 // pred_fallthru
      _
    // Predicated region
    $region38: #{tpu_custom_call.1} parent=1 // pred_check
      _
    $region39: #{tpu_custom_call.1} parent=1 // pred_check_branch
      %198 = sbr.rel (0) target = $region41
    $region40: #{tpu_custom_call.1} parent=1 // pred_region
      %200 = dma.done [#allocation5], 128
    $region41: #{tpu_custom_call.1} parent=1 // pred_fallthru
      _
    // Predicated region
    $region42: #{tpu_custom_call.1} parent=1 // pred_check
      _
    $region43: #{tpu_custom_call.1} parent=1 // pred_check_branch
      %202 = sbr.rel (0) target = $region45
    $region44: #{tpu_custom_call.1} parent=1 // pred_region
      %204 = dma.done [#allocation10], 256
    $region45: #{tpu_custom_call.1} parent=1 // pred_fallthru
      _
    %205 = vsyncpa [#allocation4], 1
    %206 = vsyncpa [#allocation7], 1
    %207 = vsyncpa [#allocation5], 1
    %208 = vsyncpa [#allocation10], 1

</llo_original>
